<compile_context>
chip_gen: v6e
topology: v6e:2x2x1
jax: 0.10.0
libtpu: 0.0.40
codegen_flags: <defaults>
</compile_context>

<pallas_src>
import jax
import jax.numpy as jnp
from jax.experimental import pallas as pl
from jax.experimental.pallas import tpu as pltpu

FEAT = 128          # input feature dim (fixed by the module: Linear(128, hidden))
HID = 64            # hidden_dim of the attention MLP
_TB_DEFAULT = 4096  # batch-tile rows per grid step (multiple of 8)
_VMEM_LIMIT = 48 << 20  # scoped-VMEM limit: fits TB=4096 double-buffered on v5e/v6e/v7x


def _round_up(x, m):
    return ((x + m - 1) // m) * m


def _pick_tb(B, tb):
    if tb is not None:
        return tb
    b8 = _round_up(B, 8)
    tb = min(_TB_DEFAULT, b8)
    # v7x megacore: make sure the grid has >= 2 steps whenever B is large enough to
    # split, so the "parallel" batch axis can shard across both TensorCores.
    if b8 >= 16 and -(-B // tb) < 2:
        tb = _round_up(-(-B // 2), 8)
    return tb


def attention_fusion_kernel(h0_ref, h1_ref, h2_ref, w_ref, bv_ref, o_ref):
    """One (TB, 128) batch tile of the attention fusion.

    h0/h1/h2 : (TB, 128)  the three branch embeddings (native dtype: f32 or bf16)
    w_ref    : (128, 64)  W.weight^T, pre-cast to the branch dtype in the wrapper
    bv_ref   : (2, 64)    row 0 = W.bias, row 1 = v.weight (both f32)
    o_ref    : (TB, 128)  fused output z_B (same dtype as the branches)

    v.bias is intentionally omitted: a constant added to all three branch
    logits cancels exactly in the softmax over branches.
    """
    w = w_ref[...]              # (128, 64), already in branch dtype (no per-step cast)
    bw = bv_ref[0:1, :]         # (1, 64)  W.bias   (f32)
    vrow = bv_ref[1:2, :]       # (1, 64)  v.weight (f32)

    h0 = h0_ref[...]
    h1 = h1_ref[...]
    h2 = h2_ref[...]

    def branch_logits(h):
        # MXU: (TB,128) @ (128,64), f32 accumulate; tanh on VPU/EUP.
        hid = jnp.tanh(jnp.dot(h, w, preferred_element_type=jnp.float32) + bw)
        # v(.) with out_features=1 as a lane reduction (XLU slot; MXU is idle slack here).
        return jnp.sum(hid * vrow, axis=-1, keepdims=True)      # (TB, 1) f32

    u0 = branch_logits(h0)
    u1 = branch_logits(h1)
    u2 = branch_logits(h2)

    # Softmax over the 3 branches (dim=0 of the original stack).
    m = jnp.maximum(jnp.maximum(u0, u1), u2)
    e0 = jnp.exp(u0 - m)
    e1 = jnp.exp(u1 - m)
    e2 = jnp.exp(u2 - m)

    # Weight by the UNNORMALIZED exps and divide once at the end; the reciprocal goes
    # to the EUP slot. Saves three lane-sparse (TB,1) muls per tile vs. normalizing
    # each alpha individually.
    inv = pl.reciprocal(e0 + e1 + e2, approx=True)               # (TB, 1) f32
    z = (e0 * h0.astype(jnp.float32)
         + e1 * h1.astype(jnp.float32)
         + e2 * h2.astype(jnp.float32)) * inv                    # (TB, 128) f32
    o_ref[...] = z.astype(o_ref.dtype)


def attention_fusion(h64, h256, h1000, w_t, b_w, v_w, v_b=None, *, tb=None):
    """Batch-tiled Pallas call. `v_b` is accepted for API parity but unused:
    softmax over branches is invariant to a constant added to every branch logit."""
    B = h64.shape[0]
    assert h64.shape == (B, FEAT) and h256.shape == (B, FEAT) and h1000.shape == (B, FEAT)
    del v_b  # cancels exactly in the branch softmax

    in_dtype = h64.dtype
    w2 = w_t.reshape(FEAT, HID).astype(in_dtype)                 # pre-cast once, not per step
    bias_v = jnp.stack(
        [b_w.reshape(HID).astype(jnp.float32),
         v_w.reshape(HID).astype(jnp.float32)], axis=0)          # (2, 64): W.bias / v.weight

    tb = _pick_tb(B, tb)
    grid = (pl.cdiv(B, tb),)

    itemsize = jnp.dtype(in_dtype).itemsize
    cost = pl.CostEstimate(
        flops=2 * 3 * B * FEAT * HID,                    # three (B,128)@(128,64) matmuls
        transcendentals=3 * B * HID + 3 * B + B,         # tanh + branch exps + reciprocal
        bytes_accessed=3 * B * FEAT * itemsize           # branch reads
        + B * FEAT * itemsize                            # output write (input dtype)
        + (FEAT * HID * itemsize + 2 * HID * 4),         # weights / merged bias buffer
    )

    return pl.pallas_call(
        attention_fusion_kernel,
        out_shape=jax.ShapeDtypeStruct((B, FEAT), in_dtype),
        grid=grid,
        in_specs=[
            pl.BlockSpec((tb, FEAT), lambda i: (i, 0)),      # h64 tile
            pl.BlockSpec((tb, FEAT), lambda i: (i, 0)),      # h256 tile
            pl.BlockSpec((tb, FEAT), lambda i: (i, 0)),      # h1000 tile
            pl.BlockSpec((FEAT, HID), lambda i: (0, 0)),     # W^T (resident across steps)
            pl.BlockSpec((2, HID), lambda i: (0, 0)),        # merged W.bias + v.weight
        ],
        out_specs=pl.BlockSpec((tb, FEAT), lambda i: (i, 0)),
        compiler_params=pltpu.CompilerParams(
            dimension_semantics=("parallel",),               # megacore sharding on v7x
            vmem_limit_bytes=_VMEM_LIMIT),                   # v5e default (16 MiB) too small for TB=4096
        cost_estimate=cost,
    )(h64, h256, h1000, w2, bias_v)


def reference(h64, h256, h1000, w_t, b_w, v_w, v_b):
    """Pure-JAX reference mirroring the PyTorch module (including v.bias)."""
    h_all = jnp.stack([h64, h256, h1000], axis=0)                   # (3, B, 128)
    u = jnp.tanh(h_all @ w_t + b_w) @ v_w.reshape(HID, 1) + v_b     # (3, B, 1)
    alpha = jax.nn.softmax(u, axis=0)
    return jnp.sum(alpha * h_all, axis=0)


if __name__ == "__main__":
    key = jax.random.PRNGKey(0)
    k1, k2, k3, kw, kbw, kv, kbv = jax.random.split(key, 7)

    B = 8  # small batch; FEAT=128, HID=64 fixed by the module

    h64 = jax.random.normal(k1, (B, FEAT), dtype=jnp.float32)
    h256 = jax.random.normal(k2, (B, FEAT), dtype=jnp.float32)
    h1000 = jax.random.normal(k3, (B, FEAT), dtype=jnp.float32)

    # Deterministic synthetic parameters (shapes match nn.Linear(128,64) / nn.Linear(64,1)).
    # w_t is W.weight^T so the kernel does a row-major (TB,128)@(128,64) matmul.
    w_t = jax.random.normal(kw, (FEAT, HID), dtype=jnp.float32) * 0.05
    b_w = jax.random.normal(kbw, (HID,), dtype=jnp.float32) * 0.05
    v_w = jax.random.normal(kv, (HID,), dtype=jnp.float32) * 0.05
    v_b = jax.random.normal(kbv, (1,), dtype=jnp.float32) * 0.05

    out = attention_fusion(h64, h256, h1000, w_t, b_w, v_w, v_b)
    out = jax.block_until_ready(out)

    ref = reference(h64, h256, h1000, w_t, b_w, v_w, v_b)
    assert out.shape == (B, FEAT)
    # Tolerance loosened slightly: the kernel uses pl.reciprocal(approx=True) (EUP) for
    # the softmax normalization, which carries a few-ULP-level relative error.
    assert jnp.allclose(out, ref, atol=5e-3, rtol=5e-3), "mismatch vs pure-JAX reference"

    print("KERNEL_OK")
</pallas_src>

<mosaic_0001>
module attributes {stable_mosaic.version = 11 : i64} {
  func.func @attention_fusion_kernel(%arg0: i32, %arg1: memref<8x128xf32, #tpu.memory_space<vmem>>, %arg2: memref<8x128xf32, #tpu.memory_space<vmem>>, %arg3: memref<8x128xf32, #tpu.memory_space<vmem>>, %arg4: memref<128x64xf32, #tpu.memory_space<vmem>>, %arg5: memref<2x64xf32, #tpu.memory_space<vmem>>, %arg6: memref<8x128xf32, #tpu.memory_space<vmem>>) attributes {dimension_semantics = [#tpu.dimension_semantics<parallel>], iteration_bounds = array<i64: 1>, scalar_prefetch = 0 : i64, scratch_operands = 0 : i64, tpu.core_type = #tpu.core_type<tc>, window_params = [{transform_indices = @transform_0, window_bounds = array<i64: 8, 128>}, {transform_indices = @transform_1, window_bounds = array<i64: 8, 128>}, {transform_indices = @transform_2, window_bounds = array<i64: 8, 128>}, {pipeline_mode = #tpu.pipeline_mode<synchronous>, transform_indices = @transform_3, window_bounds = array<i64: 128, 64>}, {pipeline_mode = #tpu.pipeline_mode<synchronous>, transform_indices = @transform_4, window_bounds = array<i64: 2, 64>}, {transform_indices = @transform_5, window_bounds = array<i64: 8, 128>}]} {
    %c0 = arith.constant 0 : index
    %c0_0 = arith.constant 0 : index
    %0 = vector.load %arg4[%c0, %c0_0] : memref<128x64xf32, #tpu.memory_space<vmem>>, vector<128x64xf32>
    %c0_1 = arith.constant 0 : index
    %c0_2 = arith.constant 0 : index
    %1 = vector.load %arg5[%c0_1, %c0_2] : memref<2x64xf32, #tpu.memory_space<vmem>>, vector<1x64xf32>
    %c1 = arith.constant 1 : index
    %c0_3 = arith.constant 0 : index
    %2 = vector.load %arg5[%c1, %c0_3] : memref<2x64xf32, #tpu.memory_space<vmem>>, vector<1x64xf32>
    %c0_4 = arith.constant 0 : index
    %c0_5 = arith.constant 0 : index
    %3 = vector.load %arg1[%c0_4, %c0_5] : memref<8x128xf32, #tpu.memory_space<vmem>>, vector<8x128xf32>
    %c0_6 = arith.constant 0 : index
    %c0_7 = arith.constant 0 : index
    %4 = vector.load %arg2[%c0_6, %c0_7] : memref<8x128xf32, #tpu.memory_space<vmem>>, vector<8x128xf32>
    %c0_8 = arith.constant 0 : index
    %c0_9 = arith.constant 0 : index
    %5 = vector.load %arg3[%c0_8, %c0_9] : memref<8x128xf32, #tpu.memory_space<vmem>>, vector<8x128xf32>
    %cst = arith.constant dense<0.000000e+00> : vector<8x64xf32>
    %6 = tpu.matmul %3, %0, %cst {dimension_numbers = #tpu.dot_dimension_numbers<[1], [0], [0], [1], [0, 0, 1, 1], [], []>} : vector<8x128xf32>, vector<128x64xf32>, vector<8x64xf32> -> vector<8x64xf32>
    %7 = vector.broadcast %1 : vector<1x64xf32> to vector<8x64xf32>
    %8 = arith.addf %6, %7 : vector<8x64xf32>
    %9 = math.tanh %8 : vector<8x64xf32>
    %10 = vector.broadcast %2 : vector<1x64xf32> to vector<8x64xf32>
    %11 = arith.mulf %9, %10 : vector<8x64xf32>
    %cst_10 = arith.constant dense<0.000000e+00> : vector<8xf32>
    %12 = vector.multi_reduction <add>, %11, %cst_10 [1] : vector<8x64xf32> to vector<8xf32>
    %13 = vector.shape_cast %12 : vector<8xf32> to vector<8x1xf32>
    %cst_11 = arith.constant dense<0.000000e+00> : vector<8x64xf32>
    %14 = tpu.matmul %4, %0, %cst_11 {dimension_numbers = #tpu.dot_dimension_numbers<[1], [0], [0], [1], [0, 0, 1, 1], [], []>} : vector<8x128xf32>, vector<128x64xf32>, vector<8x64xf32> -> vector<8x64xf32>
    %15 = vector.broadcast %1 : vector<1x64xf32> to vector<8x64xf32>
    %16 = arith.addf %14, %15 : vector<8x64xf32>
    %17 = math.tanh %16 : vector<8x64xf32>
    %18 = vector.broadcast %2 : vector<1x64xf32> to vector<8x64xf32>
    %19 = arith.mulf %17, %18 : vector<8x64xf32>
    %cst_12 = arith.constant dense<0.000000e+00> : vector<8xf32>
    %20 = vector.multi_reduction <add>, %19, %cst_12 [1] : vector<8x64xf32> to vector<8xf32>
    %21 = vector.shape_cast %20 : vector<8xf32> to vector<8x1xf32>
    %cst_13 = arith.constant dense<0.000000e+00> : vector<8x64xf32>
    %22 = tpu.matmul %5, %0, %cst_13 {dimension_numbers = #tpu.dot_dimension_numbers<[1], [0], [0], [1], [0, 0, 1, 1], [], []>} : vector<8x128xf32>, vector<128x64xf32>, vector<8x64xf32> -> vector<8x64xf32>
    %23 = vector.broadcast %1 : vector<1x64xf32> to vector<8x64xf32>
    %24 = arith.addf %22, %23 : vector<8x64xf32>
    %25 = math.tanh %24 : vector<8x64xf32>
    %26 = vector.broadcast %2 : vector<1x64xf32> to vector<8x64xf32>
    %27 = arith.mulf %25, %26 : vector<8x64xf32>
    %cst_14 = arith.constant dense<0.000000e+00> : vector<8xf32>
    %28 = vector.multi_reduction <add>, %27, %cst_14 [1] : vector<8x64xf32> to vector<8xf32>
    %29 = vector.shape_cast %28 : vector<8xf32> to vector<8x1xf32>
    %30 = arith.maximumf %13, %21 : vector<8x1xf32>
    %31 = arith.maximumf %30, %29 : vector<8x1xf32>
    %32 = arith.subf %13, %31 : vector<8x1xf32>
    %33 = math.exp %32 : vector<8x1xf32>
    %34 = arith.subf %21, %31 : vector<8x1xf32>
    %35 = math.exp %34 : vector<8x1xf32>
    %36 = arith.subf %29, %31 : vector<8x1xf32>
    %37 = math.exp %36 : vector<8x1xf32>
    %38 = arith.addf %33, %35 : vector<8x1xf32>
    %39 = arith.addf %38, %37 : vector<8x1xf32>
    %40 = tpu.reciprocal %39 {approx = true} : vector<8x1xf32> -> vector<8x1xf32>
    %41 = vector.broadcast %33 : vector<8x1xf32> to vector<8x128xf32>
    %42 = arith.mulf %41, %3 : vector<8x128xf32>
    %43 = vector.broadcast %35 : vector<8x1xf32> to vector<8x128xf32>
    %44 = arith.mulf %43, %4 : vector<8x128xf32>
    %45 = arith.addf %42, %44 : vector<8x128xf32>
    %46 = vector.broadcast %37 : vector<8x1xf32> to vector<8x128xf32>
    %47 = arith.mulf %46, %5 : vector<8x128xf32>
    %48 = arith.addf %45, %47 : vector<8x128xf32>
    %49 = vector.broadcast %40 : vector<8x1xf32> to vector<8x128xf32>
    %50 = arith.mulf %48, %49 : vector<8x128xf32>
    %c0_15 = arith.constant 0 : index
    %c0_16 = arith.constant 0 : index
    %51 = vector.load %arg6[%c0_15, %c0_16] : memref<8x128xf32, #tpu.memory_space<vmem>>, vector<8x128xf32>
    tpu.vector_store %arg6[%c0_15, %c0_16], %50 {strides = array<i32>} : memref<8x128xf32, #tpu.memory_space<vmem>>, vector<8x128xf32>,
    return
  }
  func.func @transform_0(%arg0: i32) -> (i32, i32) {
    %c0_i32 = arith.constant 0 : i32
    %c0_i32_0 = arith.constant 0 : i32
    return %arg0, %c0_i32 : i32, i32
  }
  func.func @transform_1(%arg0: i32) -> (i32, i32) {
    %c0_i32 = arith.constant 0 : i32
    %c0_i32_0 = arith.constant 0 : i32
    return %arg0, %c0_i32 : i32, i32
  }
  func.func @transform_2(%arg0: i32) -> (i32, i32) {
    %c0_i32 = arith.constant 0 : i32
    %c0_i32_0 = arith.constant 0 : i32
    return %arg0, %c0_i32 : i32, i32
  }
  func.func @transform_3(%arg0: i32) -> (i32, i32) {
    %c0_i32 = arith.constant 0 : i32
    %c0_i32_0 = arith.constant 0 : i32
    %c0_i32_1 = arith.constant 0 : i32
    return %c0_i32, %c0_i32_0 : i32, i32
  }
  func.func @transform_4(%arg0: i32) -> (i32, i32) {
    %c0_i32 = arith.constant 0 : i32
    %c0_i32_0 = arith.constant 0 : i32
    %c0_i32_1 = arith.constant 0 : i32
    return %c0_i32, %c0_i32_0 : i32, i32
  }
  func.func @transform_5(%arg0: i32) -> (i32, i32) {
    %c0_i32 = arith.constant 0 : i32
    %c0_i32_0 = arith.constant 0 : i32
    return %arg0, %c0_i32 : i32, i32
  }
}

</mosaic_0001>

<llo_original>
// kernel: tpu_custom_call.1
$region0: #{tpu_custom_call.1}
  #allocation0 [shape = 'u32[]', space=smem, size = 0x4, offset = 0x4, fixed_abs, tag = 'smem constant byte address 0x4 - core index']
  #allocation1 [shape = 'u32[144,128]{1,0:T(1,128)}', space=vmem, size = 0x12000, scoped, tag = 'internal scratch']
  %s0 = inlined_call_operand.vmem [shape: f32[8,128], index: 0, kind: input, shape index: {}]
  %s1 = inlined_call_operand.vmem [shape: f32[8,128], index: 1, kind: input, shape index: {}]
  %s2 = inlined_call_operand.vmem [shape: f32[8,128], index: 2, kind: input, shape index: {}]
  %s3 = inlined_call_operand.vmem [shape: f32[128,64], index: 3, kind: input, shape index: {}]
  %s4 = inlined_call_operand.vmem [shape: f32[2,64], index: 4, kind: input, shape index: {}]
  %s5 = inlined_call_operand.hbm [shape: f32[8,128], index: 5, kind: output, shape index: {}]
  %s6 = sld [smem:[#allocation0]]
  $region30: #{tpu_custom_call.1} parent=0
    _
  %s8 = ssub.s32 1, %s6
  %s9 = scalar_select 0, %s8, %s6
  $region1: #{tpu_custom_call.1} parent=0
    #allocation2 [shape = 'u8[4096]{0}', space=vmem, size = 0x1000, scoped, tag = 'output window, operand 0, single buffered']
    #allocation3 [shape = 's32[1]{0}', space=sflag, size = 0x4, scoped, tag = 'scoped memory for tpu_custom_call.1']
    %10 = vsyncpa [#allocation3], 0
    // Predicated region
    $region2: #{tpu_custom_call.1} parent=1 // pred_check
      _
    $region3: #{tpu_custom_call.1} parent=1 // pred_check_branch
      %12 = sbr.rel (0) target = $region5
    $region4: #{tpu_custom_call.1} parent=1 // pred_region
      _
    $region5: #{tpu_custom_call.1} parent=1 // pred_fallthru
      _
    // Predicated region
    $region6: #{tpu_custom_call.1} parent=1 // pred_check
      _
    $region7: #{tpu_custom_call.1} parent=1 // pred_check_branch
      %14 = sbr.rel (0) target = $region9
    $region8: #{tpu_custom_call.1} parent=1 // pred_region
      _
    $region9: #{tpu_custom_call.1} parent=1 // pred_fallthru
      _
    // Predicated region
    $region10: #{tpu_custom_call.1} parent=1 // pred_check
      _
    $region11: #{tpu_custom_call.1} parent=1 // pred_check_branch
      %16 = sbr.rel (0) target = $region13
    $region12: #{tpu_custom_call.1} parent=1 // pred_region
      _
    $region13: #{tpu_custom_call.1} parent=1 // pred_fallthru
      _
    // Predicated region
    $region14: #{tpu_custom_call.1} parent=1 // pred_check
      _
    $region15: #{tpu_custom_call.1} parent=1 // pred_check_branch
      %18 = sbr.rel (0) target = $region17
    $region16: #{tpu_custom_call.1} parent=1 // pred_region
      _
    $region17: #{tpu_custom_call.1} parent=1 // pred_fallthru
      _
    // Predicated region
    $region18: #{tpu_custom_call.1} parent=1 // pred_check
      _
    $region19: #{tpu_custom_call.1} parent=1 // pred_check_branch
      %20 = sbr.rel (0) target = $region21
    $region20: #{tpu_custom_call.1} parent=1 // pred_region
      _
    $region21: #{tpu_custom_call.1} parent=1 // pred_fallthru
      _
    %v21 = vld [vmem:[%s3] sm:$0xff]
    %v22 = vld [vmem:[%s3 + $0x8] sm:$0xff]
    %v23 = vld [vmem:[%s3 + $0x10] sm:$0xff]
    %v24 = vld [vmem:[%s3 + $0x18] sm:$0xff]
    %v25 = vld [vmem:[%s3 + $0x20] sm:$0xff]
    %v26 = vld [vmem:[%s3 + $0x28] sm:$0xff]
    %v27 = vld [vmem:[%s3 + $0x30] sm:$0xff]
    %v28 = vld [vmem:[%s3 + $0x38] sm:$0xff]
    %v29 = vld [vmem:[%s3 + $0x40] sm:$0xff]
    %v30 = vld [vmem:[%s3 + $0x48] sm:$0xff]
    %v31 = vld [vmem:[%s3 + $0x50] sm:$0xff]
    %v32 = vld [vmem:[%s3 + $0x58] sm:$0xff]
    %v33 = vld [vmem:[%s3 + $0x60] sm:$0xff]
    %v34 = vld [vmem:[%s3 + $0x68] sm:$0xff]
    %v35 = vld [vmem:[%s3 + $0x70] sm:$0xff]
    %v36 = vld [vmem:[%s3 + $0x78] sm:$0xff]
    %v37 = vld [vmem:[%s4] sm:$0x1]
    %v38 = vld [vmem:[%s4 + $0x1] sm:$0x1]
    %v39 = vld [vmem:[%s0] sm:$0xff]
    %v40 = vld [vmem:[%s1] sm:$0xff]
    %v41 = vld [vmem:[%s2] sm:$0xff]
    %v42 = vlaneseq
    %v43 = vshrl.u32 %v42, 7
    %v44 = vsub.s32 0, %v43
    %v45 = vrot.slane %v37, %v44
    %46 = vmatprep.subr.mxu0 0.0
    %47 = vmatpush1.msra.mxu0 %v36
    %48 = vmatprep.subr.mxu0 0.0
    %49 = vmatpush1.msra.mxu0 %v35
    %50 = vmatprep.subr.mxu0 0.0
    %51 = vmatpush1.msra.mxu0 %v34
    %52 = vmatprep.subr.mxu0 0.0
    %53 = vmatpush1.msra.mxu0 %v33
    %54 = vmatprep.subr.mxu0 0.0
    %55 = vmatpush1.msra.mxu0 %v32
    %56 = vmatprep.subr.mxu0 0.0
    %57 = vmatpush1.msra.mxu0 %v31
    %58 = vmatprep.subr.mxu0 0.0
    %59 = vmatpush1.msra.mxu0 %v30
    %60 = vmatprep.subr.mxu0 0.0
    %61 = vmatpush1.msra.mxu0 %v29
    %62 = vmatprep.subr.mxu0 0.0
    %63 = vmatpush1.msra.mxu0 %v28
    %64 = vmatprep.subr.mxu0 0.0
    %65 = vmatpush1.msra.mxu0 %v27
    %66 = vmatprep.subr.mxu0 0.0
    %67 = vmatpush1.msra.mxu0 %v26
    %68 = vmatprep.subr.mxu0 0.0
    %69 = vmatpush1.msra.mxu0 %v25
    %70 = vmatprep.subr.mxu0 0.0
    %71 = vmatpush1.msra.mxu0 %v24
    %72 = vmatprep.subr.mxu0 0.0
    %73 = vmatpush1.msra.mxu0 %v23
    %74 = vmatprep.subr.mxu0 0.0
    %75 = vmatpush1.msra.mxu0 %v22
    %76 = vmatprep.subr.mxu0 0.0
    %77 = vmatpush1.msra.mxu0 %v21
    %78 = vmatprep.subr.mxu0 0.0
    %79 = vmatpush2.msra.mxu0 0.0
    %80 = vmatprep.subr.mxu0 0.0
    %81 = vmatpush2.msra.mxu0 0.0
    %82 = vmatprep.subr.mxu0 0.0
    %83 = vmatpush2.msra.mxu0 0.0
    %84 = vmatprep.subr.mxu0 0.0
    %85 = vmatpush2.msra.mxu0 0.0
    %86 = vmatprep.subr.mxu0 0.0
    %87 = vmatpush2.msra.mxu0 0.0
    %88 = vmatprep.subr.mxu0 0.0
    %89 = vmatpush2.msra.mxu0 0.0
    %90 = vmatprep.subr.mxu0 0.0
    %91 = vmatpush2.msra.mxu0 0.0
    %92 = vmatprep.subr.mxu0 0.0
    %93 = vmatpush2.msra.mxu0 0.0
    %94 = vmatprep.subr.mxu0 0.0
    %95 = vmatpush2.msra.mxu0 0.0
    %96 = vmatprep.subr.mxu0 0.0
    %97 = vmatpush2.msra.mxu0 0.0
    %98 = vmatprep.subr.mxu0 0.0
    %99 = vmatpush2.msra.mxu0 0.0
    %100 = vmatprep.subr.mxu0 0.0
    %101 = vmatpush2.msra.mxu0 0.0
    %102 = vmatprep.subr.mxu0 0.0
    %103 = vmatpush2.msra.mxu0 0.0
    %104 = vmatprep.subr.mxu0 0.0
    %105 = vmatpush2.msra.mxu0 0.0
    %106 = vmatprep.subr.mxu0 0.0
    %107 = vmatpush2.msra.mxu0 0.0
    %108 = vmatprep.subr.mxu0 0.0
    %109 = vmatpush2.msra.mxu0 0.0
    %110 = vmatprep.mubr.f32.mxu0 0.0
    %111 = vmatmul.mubr.f32.gmra.mxu0 %v39
    %v112 = vpop.f32.mrf.mxu0
    %v113 = vadd.f32 %v45, %v112
    %v114 = vpop.f32.mrf.mxu0
    %115 = vdwg.mxu0
    %v116 = vtanh.pop %v113
    %v117 = vlaneseq
    %v118 = vshrl.u32 %v117, 7
    %v119 = vsub.s32 0, %v118
    %v120 = vrot.slane %v38, %v119
    %v121 = vmul.f32 %v116, %v120
    %vm122 = vcmask 523264
    %v123 = vsel %vm122, %v121, 0.0
    %124 = vadd.xlane.f32.xlu0 %v123
    %v125 = vpop.xlane.xlu0 %124
    %126 = vmatprep.subr.mxu0 0.0
    %127 = vmatpush1.msra.mxu0 %v36
    %128 = vmatprep.subr.mxu0 0.0
    %129 = vmatpush1.msra.mxu0 %v35
    %130 = vmatprep.subr.mxu0 0.0
    %131 = vmatpush1.msra.mxu0 %v34
    %132 = vmatprep.subr.mxu0 0.0
    %133 = vmatpush1.msra.mxu0 %v33
    %134 = vmatprep.subr.mxu0 0.0
    %135 = vmatpush1.msra.mxu0 %v32
    %136 = vmatprep.subr.mxu0 0.0
    %137 = vmatpush1.msra.mxu0 %v31
    %138 = vmatprep.subr.mxu0 0.0
    %139 = vmatpush1.msra.mxu0 %v30
    %140 = vmatprep.subr.mxu0 0.0
    %141 = vmatpush1.msra.mxu0 %v29
    %142 = vmatprep.subr.mxu0 0.0
    %143 = vmatpush1.msra.mxu0 %v28
    %144 = vmatprep.subr.mxu0 0.0
    %145 = vmatpush1.msra.mxu0 %v27
    %146 = vmatprep.subr.mxu0 0.0
    %147 = vmatpush1.msra.mxu0 %v26
    %148 = vmatprep.subr.mxu0 0.0
    %149 = vmatpush1.msra.mxu0 %v25
    %150 = vmatprep.subr.mxu0 0.0
    %151 = vmatpush1.msra.mxu0 %v24
    %152 = vmatprep.subr.mxu0 0.0
    %153 = vmatpush1.msra.mxu0 %v23
    %154 = vmatprep.subr.mxu0 0.0
    %155 = vmatpush1.msra.mxu0 %v22
    %156 = vmatprep.subr.mxu0 0.0
    %157 = vmatpush1.msra.mxu0 %v21
    %158 = vmatprep.subr.mxu0 0.0
    %159 = vmatpush2.msra.mxu0 0.0
    %160 = vmatprep.subr.mxu0 0.0
    %161 = vmatpush2.msra.mxu0 0.0
    %162 = vmatprep.subr.mxu0 0.0
    %163 = vmatpush2.msra.mxu0 0.0
    %164 = vmatprep.subr.mxu0 0.0
    %165 = vmatpush2.msra.mxu0 0.0
    %166 = vmatprep.subr.mxu0 0.0
    %167 = vmatpush2.msra.mxu0 0.0
    %168 = vmatprep.subr.mxu0 0.0
    %169 = vmatpush2.msra.mxu0 0.0
    %170 = vmatprep.subr.mxu0 0.0
    %171 = vmatpush2.msra.mxu0 0.0
    %172 = vmatprep.subr.mxu0 0.0
    %173 = vmatpush2.msra.mxu0 0.0
    %174 = vmatprep.subr.mxu0 0.0
    %175 = vmatpush2.msra.mxu0 0.0
    %176 = vmatprep.subr.mxu0 0.0
    %177 = vmatpush2.msra.mxu0 0.0
    %178 = vmatprep.subr.mxu0 0.0
    %179 = vmatpush2.msra.mxu0 0.0
    %180 = vmatprep.subr.mxu0 0.0
    %181 = vmatpush2.msra.mxu0 0.0
    %182 = vmatprep.subr.mxu0 0.0
    %183 = vmatpush2.msra.mxu0 0.0
    %184 = vmatprep.subr.mxu0 0.0
    %185 = vmatpush2.msra.mxu0 0.0
    %186 = vmatprep.subr.mxu0 0.0
    %187 = vmatpush2.msra.mxu0 0.0
    %188 = vmatprep.subr.mxu0 0.0
    %189 = vmatpush2.msra.mxu0 0.0
    %190 = vmatprep.mubr.f32.mxu0 0.0
    %191 = vmatmul.mubr.f32.gmra.mxu0 %v40
    %v192 = vpop.f32.mrf.mxu0
    %v193 = vadd.f32 %v45, %v192
    %v194 = vpop.f32.mrf.mxu0
    %195 = vdwg.mxu0
    %v196 = vtanh.pop %v193
    %v197 = vmul.f32 %v196, %v120
    %v198 = vsel %vm122, %v197, 0.0
    %199 = vadd.xlane.f32.xlu0 %v198
    %v200 = vpop.xlane.xlu0 %199
    %201 = vmatprep.subr.mxu0 0.0
    %202 = vmatpush1.msra.mxu0 %v36
    %203 = vmatprep.subr.mxu0 0.0
    %204 = vmatpush1.msra.mxu0 %v35
    %205 = vmatprep.subr.mxu0 0.0
    %206 = vmatpush1.msra.mxu0 %v34
    %207 = vmatprep.subr.mxu0 0.0
    %208 = vmatpush1.msra.mxu0 %v33
    %209 = vmatprep.subr.mxu0 0.0
    %210 = vmatpush1.msra.mxu0 %v32
    %211 = vmatprep.subr.mxu0 0.0
    %212 = vmatpush1.msra.mxu0 %v31
    %213 = vmatprep.subr.mxu0 0.0
    %214 = vmatpush1.msra.mxu0 %v30
    %215 = vmatprep.subr.mxu0 0.0
    %216 = vmatpush1.msra.mxu0 %v29
    %217 = vmatprep.subr.mxu0 0.0
    %218 = vmatpush1.msra.mxu0 %v28
    %219 = vmatprep.subr.mxu0 0.0
    %220 = vmatpush1.msra.mxu0 %v27
    %221 = vmatprep.subr.mxu0 0.0
    %222 = vmatpush1.msra.mxu0 %v26
    %223 = vmatprep.subr.mxu0 0.0
    %224 = vmatpush1.msra.mxu0 %v25
    %225 = vmatprep.subr.mxu0 0.0
    %226 = vmatpush1.msra.mxu0 %v24
    %227 = vmatprep.subr.mxu0 0.0
    %228 = vmatpush1.msra.mxu0 %v23
    %229 = vmatprep.subr.mxu0 0.0
    %230 = vmatpush1.msra.mxu0 %v22
    %231 = vmatprep.subr.mxu0 0.0
    %232 = vmatpush1.msra.mxu0 %v21
    %233 = vmatprep.subr.mxu0 0.0
    %234 = vmatpush2.msra.mxu0 0.0
    %235 = vmatprep.subr.mxu0 0.0
    %236 = vmatpush2.msra.mxu0 0.0
    %237 = vmatprep.subr.mxu0 0.0
    %238 = vmatpush2.msra.mxu0 0.0
    %239 = vmatprep.subr.mxu0 0.0
    %240 = vmatpush2.msra.mxu0 0.0
    %241 = vmatprep.subr.mxu0 0.0
    %242 = vmatpush2.msra.mxu0 0.0
    %243 = vmatprep.subr.mxu0 0.0
    %244 = vmatpush2.msra.mxu0 0.0
    %245 = vmatprep.subr.mxu0 0.0
    %246 = vmatpush2.msra.mxu0 0.0
    %247 = vmatprep.subr.mxu0 0.0
    %248 = vmatpush2.msra.mxu0 0.0
    %249 = vmatprep.subr.mxu0 0.0
    %250 = vmatpush2.msra.mxu0 0.0
    %251 = vmatprep.subr.mxu0 0.0
    %252 = vmatpush2.msra.mxu0 0.0
    %253 = vmatprep.subr.mxu0 0.0
    %254 = vmatpush2.msra.mxu0 0.0
    %255 = vmatprep.subr.mxu0 0.0
    %256 = vmatpush2.msra.mxu0 0.0
    %257 = vmatprep.subr.mxu0 0.0
    %258 = vmatpush2.msra.mxu0 0.0
    %259 = vmatprep.subr.mxu0 0.0
    %260 = vmatpush2.msra.mxu0 0.0
    %261 = vmatprep.subr.mxu0 0.0
    %262 = vmatpush2.msra.mxu0 0.0
    %263 = vmatprep.subr.mxu0 0.0
    %264 = vmatpush2.msra.mxu0 0.0
    %265 = vmatprep.mubr.f32.mxu0 0.0
    %266 = vmatmul.mubr.f32.gmra.mxu0 %v41
    %v267 = vpop.f32.mrf.mxu0
    %v268 = vadd.f32 %v45, %v267
    %v269 = vpop.f32.mrf.mxu0
    %270 = vdwg.mxu0
    %v271 = vtanh.pop %v268
    %v272 = vmul.f32 %v271, %v120
    %v273 = vsel %vm122, %v272, 0.0
    %274 = vadd.xlane.f32.xlu0 %v273
    %v275 = vpop.xlane.xlu0 %274
    %v276 = vmax.f32 %v125, %v200
    %v277 = vmax.f32 %v276, %v275
    %v278 = vsub.f32 %v125, %v277
    %v279 = vmul.f32 %v278, 1.442695
    %v280 = vpow.pop %v279
    %v281 = vsub.f32 %v200, %v277
    %v282 = vmul.f32 %v281, 1.442695
    %v283 = vpow.pop %v282
    %v284 = vsub.f32 %v275, %v277
    %v285 = vmul.f32 %v284, 1.442695
    %v286 = vpow.pop %v285
    %v287 = vadd.f32 %v280, %v283
    %v288 = vadd.f32 %v287, %v286
    %v289 = vrcp.pop %v288
    %v290 = vmul.f32 %v280, %v39
    %v291 = vmul.f32 %v283, %v40
    %v292 = vadd.f32 %v290, %v291
    %v293 = vmul.f32 %v286, %v41
    %v294 = vadd.f32 %v292, %v293
    %v295 = vmul.f32 %v294, %v289
    %296 = vst [vmem:[#allocation2] sm:$0xff] %v295
    // Predicated region
    $region22: #{tpu_custom_call.1} parent=1 // pred_check
      _
    $region23: #{tpu_custom_call.1} parent=1 // pred_check_branch
      %298 = sbr.rel (0) target = $region25
    $region24: #{tpu_custom_call.1} parent=1 // pred_region
      %s300 = ssub.s32 128, 128
      %301 = vsyncadd [#allocation3], %s300
      %s303 = sshll.u32 [#allocation2], 4
      %s304 = int_to_ptr.vmem [resolvable:$true] %s303
      %306 = dma.vmem_to_hbm [thread:$0]  %s304, 128, %s5, [#allocation3]
    $region25: #{tpu_custom_call.1} parent=1 // pred_fallthru
      _
    // Predicated region
    $region26: #{tpu_custom_call.1} parent=1 // pred_check
      _
    $region27: #{tpu_custom_call.1} parent=1 // pred_check_branch
      %308 = sbr.rel (0) target = $region29
    $region28: #{tpu_custom_call.1} parent=1 // pred_region
      %309 = dma.done [#allocation3], 128
    $region29: #{tpu_custom_call.1} parent=1 // pred_fallthru
      _
    %310 = vsyncpa [#allocation3], 1

</llo_original>
